<compile_context>
chip_gen: v7x
topology: tpu7x:2x2x1
jax: 0.10.0
libtpu: 0.0.40
codegen_flags: <defaults>
</compile_context>

<pallas_src>
import functools

import jax
import jax.numpy as jnp
from jax.experimental import pallas as pl
from jax.experimental.pallas import tpu as pltpu

LN_EPS = 1e-5            # PyTorch nn.LayerNorm default
LOG_SIG_MIN = -20.0
LOG_SIG_MAX = 2.0
_MAX_TILE = 512          # single grid step below this; 512-row tiles above


def _actor_kernel(state_ref,
                  w1_ref, v1_ref,
                  w2_ref, v2_ref,
                  wh_ref, bh_ref,
                  out_ref):
    x = state_ref[...]

    # --- base layer 1: Linear -> LayerNorm -> ReLU ---
    v1 = v1_ref[...]                                  # rows: [bias, gamma, beta]
    h = jnp.dot(x, w1_ref[...], preferred_element_type=jnp.float32) + v1[0:1, :]
    mu = jnp.mean(h, axis=-1, keepdims=True)
    c = h - mu                                        # centered, shared var/norm
    var = jnp.mean(c * c, axis=-1, keepdims=True)
    h = c * jax.lax.rsqrt(var + LN_EPS) * v1[1:2, :] + v1[2:3, :]
    h = jnp.maximum(h, 0.0)

    # --- base layer 2: Linear -> LayerNorm -> ReLU ---
    v2 = v2_ref[...]
    h2 = jnp.dot(h, w2_ref[...], preferred_element_type=jnp.float32) + v2[0:1, :]
    mu2 = jnp.mean(h2, axis=-1, keepdims=True)
    c2 = h2 - mu2
    var2 = jnp.mean(c2 * c2, axis=-1, keepdims=True)
    h2 = c2 * jax.lax.rsqrt(var2 + LN_EPS) * v2[1:2, :] + v2[2:3, :]
    h2 = jnp.maximum(h2, 0.0)

    # --- fused heads: one (tile, H) @ (H, 3) MXU pass, single-temp epilogue ---
    # col 0 = mean (tanh), col 1 = log_std_rl (clamp), col 2 = std_sl (identity)
    yb = jnp.dot(h2, wh_ref[...], preferred_element_type=jnp.float32) + bh_ref[...]
    col = jax.lax.broadcasted_iota(jnp.int32, yb.shape, 1)
    out_ref[...] = jnp.where(
        col == 0, jnp.tanh(yb),
        jnp.where(col == 1, jnp.clip(yb, LOG_SIG_MIN, LOG_SIG_MAX), yb))


def prepare_params(p):
    """Build the fused/packed kernel parameters ONCE (outside the call path)."""
    return {
        "w1": p["w1"],                                                    # (S, H)
        "v1": jnp.concatenate([p["b1"], p["g1"], p["be1"]], axis=0),      # (3, H)
        "w2": p["w2"],                                                    # (H, H)
        "v2": jnp.concatenate([p["b2"], p["g2"], p["be2"]], axis=0),      # (3, H)
        "wh": jnp.concatenate([p["wm"], p["wr"], p["ws"]], axis=1),       # (H, 3)
        "bh": jnp.concatenate([p["bm"], p["br"], p["bs"]], axis=1),       # (1, 3)
    }


def _padded_bytes(rows, cols):
    """f32 bytes of a VMEM tile after (8, 128) layout padding."""
    return ((rows + 7) // 8 * 8) * ((cols + 127) // 128 * 128) * 4


@functools.partial(jax.jit, static_argnames=("batch_tile",))
def actor_forward(state, fused, *, batch_tile=None):
    """state: (B, S) float32.  Returns (mean, log_std_rl, std_sl), each (B, 1)."""
    B, S = state.shape
    H = fused["w1"].shape[1]

    if batch_tile is None:
        if B <= _MAX_TILE:
            # One grid step: no useless pipeline stages on the 1-TC v5e/v6e,
            # and dual-TC splitting on v7x does not pay off at these sizes.
            tile = max(8, ((B + 7) // 8) * 8)
        else:
            # Large batches: 512-row tiles (amortize per-step overhead and the
            # constant-weight re-touch), sharded across TCs via "parallel".
            tile = _MAX_TILE
    else:
        tile = batch_tile

    # Pad batch only if needed (tile = round_up(B, 8) usually makes this a no-op).
    B_pad = pl.cdiv(B, tile) * tile
    x = state if B_pad == B else jnp.pad(state, ((0, B_pad - B), (0, 0)))

    # Explicit scoped-VMEM budget: double-buffered I/O tiles + (conservatively
    # double-buffered) constant weights + activation headroom + slack.
    est = (2 * (_padded_bytes(tile, S) + _padded_bytes(tile, 3))
           + 2 * (_padded_bytes(S, H) + _padded_bytes(H, H) + _padded_bytes(H, 3)
                  + 2 * _padded_bytes(3, H) + _padded_bytes(1, 3))
           + 6 * _padded_bytes(tile, H)
           + (4 << 20))
    vmem_limit = int(min(64 << 20, max(est, 16 << 20)))

    const = lambda shape: pl.BlockSpec(shape, lambda i: (0, 0))

    grid_spec = pltpu.PrefetchScalarGridSpec(
        num_scalar_prefetch=0,
        grid=(B_pad // tile,),
        in_specs=[
            pl.BlockSpec((tile, S), lambda i: (i, 0)),   # state tile
            const((S, H)), const((3, H)),                # layer1: W, [b;gamma;beta]
            const((H, H)), const((3, H)),                # layer2: W, [b;gamma;beta]
            const((H, 3)), const((1, 3)),                # fused heads: W, bias
        ],
        out_specs=pl.BlockSpec((tile, 3), lambda i: (i, 0)),   # packed outputs
    )

    cost = pl.CostEstimate(
        flops=2 * B_pad * (S * H + H * H + 3 * H) + 12 * B_pad * H,
        transcendentals=3 * B_pad,
        bytes_accessed=4 * (B_pad * (S + 3) + S * H + H * H + 9 * H + 3),
    )

    out = pl.pallas_call(
        _actor_kernel,
        grid_spec=grid_spec,
        out_shape=jax.ShapeDtypeStruct((B_pad, 3), jnp.float32),
        compiler_params=pltpu.CompilerParams(
            dimension_semantics=("parallel",),
            vmem_limit_bytes=vmem_limit),
        cost_estimate=cost,
    )(
        x,
        fused["w1"], fused["v1"],
        fused["w2"], fused["v2"],
        fused["wh"], fused["bh"],
    )

    mean = out[:B, 0:1]
    log_std_rl = out[:B, 1:2]
    std_sl = out[:B, 2:3]
    return mean, log_std_rl, std_sl


def init_params(key, state_size, fc_dims):
    """Deterministic synthetic init (shapes match the PyTorch module)."""
    ks = jax.random.split(key, 10)
    scale = 0.1
    f32 = jnp.float32
    return {
        # base[0]: Linear(state_size, fc_dims)
        "w1": scale * jax.random.normal(ks[0], (state_size, fc_dims), f32),
        "b1": scale * jax.random.normal(ks[1], (1, fc_dims), f32),
        # base[1]: LayerNorm(fc_dims) (elementwise affine)
        "g1": jnp.ones((1, fc_dims), f32),
        "be1": jnp.zeros((1, fc_dims), f32),
        # base[3]: Linear(fc_dims, fc_dims)
        "w2": scale * jax.random.normal(ks[2], (fc_dims, fc_dims), f32),
        "b2": scale * jax.random.normal(ks[3], (1, fc_dims), f32),
        # base[4]: LayerNorm(fc_dims)
        "g2": jnp.ones((1, fc_dims), f32),
        "be2": jnp.zeros((1, fc_dims), f32),
        # mean_linear: Linear(fc_dims, 1)
        "wm": scale * jax.random.normal(ks[4], (fc_dims, 1), f32),
        "bm": scale * jax.random.normal(ks[5], (1, 1), f32),
        # log_std_linear_rl: Linear(fc_dims, 1)
        "wr": scale * jax.random.normal(ks[6], (fc_dims, 1), f32),
        "br": scale * jax.random.normal(ks[7], (1, 1), f32),
        # std_linear_sl: Linear(fc_dims, 1)
        "ws": scale * jax.random.normal(ks[8], (fc_dims, 1), f32),
        "bs": scale * jax.random.normal(ks[9], (1, 1), f32),
    }


def actor_forward_ref(state, p):
    """Pure-JAX reference of the PyTorch forward."""
    def ln(x, g, b):
        mu = jnp.mean(x, axis=-1, keepdims=True)
        var = jnp.mean((x - mu) ** 2, axis=-1, keepdims=True)
        return (x - mu) * jax.lax.rsqrt(var + LN_EPS) * g + b

    h = jnp.maximum(ln(state @ p["w1"] + p["b1"], p["g1"], p["be1"]), 0.0)
    h = jnp.maximum(ln(h @ p["w2"] + p["b2"], p["g2"], p["be2"]), 0.0)
    mean = jnp.tanh(h @ p["wm"] + p["bm"])
    log_std_rl = jnp.clip(h @ p["wr"] + p["br"], LOG_SIG_MIN, LOG_SIG_MAX)
    std_sl = h @ p["ws"] + p["bs"]
    return mean, log_std_rl, std_sl


def _check(state, params, fused):
    mean, log_std_rl, std_sl = actor_forward(state, fused)
    jax.block_until_ready((mean, log_std_rl, std_sl))
    mean_r, log_std_r, std_sl_r = actor_forward_ref(state, params)
    B = state.shape[0]
    assert mean.shape == (B, 1)
    assert log_std_rl.shape == (B, 1)
    assert std_sl.shape == (B, 1)
    assert jnp.allclose(mean, mean_r, atol=1e-5)
    assert jnp.allclose(log_std_rl, log_std_r, atol=1e-5)
    assert jnp.allclose(std_sl, std_sl_r, atol=1e-5)


if __name__ == "__main__":
    key = jax.random.PRNGKey(0)
    k_params, k_state = jax.random.split(key)

    state_size = 16
    fc_dims = 32
    params = init_params(k_params, state_size, fc_dims)
    fused = prepare_params(params)          # fused head / packed LN params, once
    jax.block_until_ready(fused)

    # sublane-aligned batch: single grid step, no padding
    state16 = jax.random.normal(k_state, (16, state_size), jnp.float32)
    _check(state16, params, fused)

    # non-multiple-of-8 batch: exercises the zero-padding path
    state12 = state16[:12]
    _check(state12, params, fused)

    print("KERNEL_OK")
</pallas_src>

<mosaic_0001>
module attributes {stable_mosaic.version = 11 : i64} {
  func.func @_actor_kernel(%arg0: i32, %arg1: memref<16x16xf32, #tpu.memory_space<vmem>>, %arg2: memref<16x32xf32, #tpu.memory_space<vmem>>, %arg3: memref<3x32xf32, #tpu.memory_space<vmem>>, %arg4: memref<32x32xf32, #tpu.memory_space<vmem>>, %arg5: memref<3x32xf32, #tpu.memory_space<vmem>>, %arg6: memref<32x3xf32, #tpu.memory_space<vmem>>, %arg7: memref<1x3xf32, #tpu.memory_space<vmem>>, %arg8: memref<16x3xf32, #tpu.memory_space<vmem>>) attributes {dimension_semantics = [#tpu.dimension_semantics<parallel>], iteration_bounds = array<i64: 1>, scalar_prefetch = 0 : i64, scratch_operands = 0 : i64, tpu.core_type = #tpu.core_type<tc>, window_params = [{transform_indices = @transform_0, window_bounds = array<i64: 16, 16>}, {pipeline_mode = #tpu.pipeline_mode<synchronous>, transform_indices = @transform_1, window_bounds = array<i64: 16, 32>}, {pipeline_mode = #tpu.pipeline_mode<synchronous>, transform_indices = @transform_2, window_bounds = array<i64: 3, 32>}, {pipeline_mode = #tpu.pipeline_mode<synchronous>, transform_indices = @transform_3, window_bounds = array<i64: 32, 32>}, {pipeline_mode = #tpu.pipeline_mode<synchronous>, transform_indices = @transform_4, window_bounds = array<i64: 3, 32>}, {pipeline_mode = #tpu.pipeline_mode<synchronous>, transform_indices = @transform_5, window_bounds = array<i64: 32, 3>}, {pipeline_mode = #tpu.pipeline_mode<synchronous>, transform_indices = @transform_6, window_bounds = array<i64: 1, 3>}, {transform_indices = @transform_7, window_bounds = array<i64: 16, 3>}]} {
    %c0 = arith.constant 0 : index
    %c0_0 = arith.constant 0 : index
    %0 = vector.load %arg1[%c0, %c0_0] : memref<16x16xf32, #tpu.memory_space<vmem>>, vector<16x16xf32>
    %c0_1 = arith.constant 0 : index
    %c0_2 = arith.constant 0 : index
    %1 = vector.load %arg3[%c0_1, %c0_2] : memref<3x32xf32, #tpu.memory_space<vmem>>, vector<3x32xf32>
    %c0_3 = arith.constant 0 : index
    %c0_4 = arith.constant 0 : index
    %2 = vector.load %arg2[%c0_3, %c0_4] : memref<16x32xf32, #tpu.memory_space<vmem>>, vector<16x32xf32>
    %cst = arith.constant dense<0.000000e+00> : vector<16x32xf32>
    %3 = tpu.matmul %0, %2, %cst {dimension_numbers = #tpu.dot_dimension_numbers<[1], [0], [0], [1], [0, 0, 1, 1], [], []>} : vector<16x16xf32>, vector<16x32xf32>, vector<16x32xf32> -> vector<16x32xf32>
    %4 = vector.extract_strided_slice %1 {offsets = [0, 0], sizes = [1, 32], strides = [1, 1]} : vector<3x32xf32> to vector<1x32xf32>
    %5 = vector.broadcast %4 : vector<1x32xf32> to vector<16x32xf32>
    %6 = arith.addf %3, %5 : vector<16x32xf32>
    %cst_5 = arith.constant dense<0.000000e+00> : vector<16xf32>
    %7 = vector.multi_reduction <add>, %6, %cst_5 [1] : vector<16x32xf32> to vector<16xf32>
    %8 = vector.shape_cast %7 : vector<16xf32> to vector<16x1xf32>
    %cst_6 = arith.constant 3.200000e+01 : f32
    %9 = vector.broadcast %cst_6 : f32 to vector<16x1xf32>
    %10 = arith.divf %8, %9 : vector<16x1xf32>
    %11 = vector.broadcast %10 : vector<16x1xf32> to vector<16x32xf32>
    %12 = arith.subf %6, %11 : vector<16x32xf32>
    %13 = arith.mulf %12, %12 : vector<16x32xf32>
    %cst_7 = arith.constant dense<0.000000e+00> : vector<16xf32>
    %14 = vector.multi_reduction <add>, %13, %cst_7 [1] : vector<16x32xf32> to vector<16xf32>
    %15 = vector.shape_cast %14 : vector<16xf32> to vector<16x1xf32>
    %cst_8 = arith.constant 3.200000e+01 : f32
    %16 = vector.broadcast %cst_8 : f32 to vector<16x1xf32>
    %17 = arith.divf %15, %16 : vector<16x1xf32>
    %cst_9 = arith.constant 9.99999974E-6 : f32
    %18 = vector.broadcast %cst_9 : f32 to vector<16x1xf32>
    %19 = arith.addf %17, %18 : vector<16x1xf32>
    %20 = math.rsqrt %19 : vector<16x1xf32>
    %21 = vector.broadcast %20 : vector<16x1xf32> to vector<16x32xf32>
    %22 = arith.mulf %12, %21 : vector<16x32xf32>
    %23 = vector.extract_strided_slice %1 {offsets = [1, 0], sizes = [1, 32], strides = [1, 1]} : vector<3x32xf32> to vector<1x32xf32>
    %24 = vector.broadcast %23 : vector<1x32xf32> to vector<16x32xf32>
    %25 = arith.mulf %22, %24 : vector<16x32xf32>
    %26 = vector.extract_strided_slice %1 {offsets = [2, 0], sizes = [1, 32], strides = [1, 1]} : vector<3x32xf32> to vector<1x32xf32>
    %27 = vector.broadcast %26 : vector<1x32xf32> to vector<16x32xf32>
    %28 = arith.addf %25, %27 : vector<16x32xf32>
    %cst_10 = arith.constant 0.000000e+00 : f32
    %29 = vector.broadcast %cst_10 : f32 to vector<16x32xf32>
    %30 = arith.maximumf %28, %29 : vector<16x32xf32>
    %c0_11 = arith.constant 0 : index
    %c0_12 = arith.constant 0 : index
    %31 = vector.load %arg5[%c0_11, %c0_12] : memref<3x32xf32, #tpu.memory_space<vmem>>, vector<3x32xf32>
    %c0_13 = arith.constant 0 : index
    %c0_14 = arith.constant 0 : index
    %32 = vector.load %arg4[%c0_13, %c0_14] : memref<32x32xf32, #tpu.memory_space<vmem>>, vector<32x32xf32>
    %cst_15 = arith.constant dense<0.000000e+00> : vector<16x32xf32>
    %33 = tpu.matmul %30, %32, %cst_15 {dimension_numbers = #tpu.dot_dimension_numbers<[1], [0], [0], [1], [0, 0, 1, 1], [], []>} : vector<16x32xf32>, vector<32x32xf32>, vector<16x32xf32> -> vector<16x32xf32>
    %34 = vector.extract_strided_slice %31 {offsets = [0, 0], sizes = [1, 32], strides = [1, 1]} : vector<3x32xf32> to vector<1x32xf32>
    %35 = vector.broadcast %34 : vector<1x32xf32> to vector<16x32xf32>
    %36 = arith.addf %33, %35 : vector<16x32xf32>
    %cst_16 = arith.constant dense<0.000000e+00> : vector<16xf32>
    %37 = vector.multi_reduction <add>, %36, %cst_16 [1] : vector<16x32xf32> to vector<16xf32>
    %38 = vector.shape_cast %37 : vector<16xf32> to vector<16x1xf32>
    %cst_17 = arith.constant 3.200000e+01 : f32
    %39 = vector.broadcast %cst_17 : f32 to vector<16x1xf32>
    %40 = arith.divf %38, %39 : vector<16x1xf32>
    %41 = vector.broadcast %40 : vector<16x1xf32> to vector<16x32xf32>
    %42 = arith.subf %36, %41 : vector<16x32xf32>
    %43 = arith.mulf %42, %42 : vector<16x32xf32>
    %cst_18 = arith.constant dense<0.000000e+00> : vector<16xf32>
    %44 = vector.multi_reduction <add>, %43, %cst_18 [1] : vector<16x32xf32> to vector<16xf32>
    %45 = vector.shape_cast %44 : vector<16xf32> to vector<16x1xf32>
    %cst_19 = arith.constant 3.200000e+01 : f32
    %46 = vector.broadcast %cst_19 : f32 to vector<16x1xf32>
    %47 = arith.divf %45, %46 : vector<16x1xf32>
    %cst_20 = arith.constant 9.99999974E-6 : f32
    %48 = vector.broadcast %cst_20 : f32 to vector<16x1xf32>
    %49 = arith.addf %47, %48 : vector<16x1xf32>
    %50 = math.rsqrt %49 : vector<16x1xf32>
    %51 = vector.broadcast %50 : vector<16x1xf32> to vector<16x32xf32>
    %52 = arith.mulf %42, %51 : vector<16x32xf32>
    %53 = vector.extract_strided_slice %31 {offsets = [1, 0], sizes = [1, 32], strides = [1, 1]} : vector<3x32xf32> to vector<1x32xf32>
    %54 = vector.broadcast %53 : vector<1x32xf32> to vector<16x32xf32>
    %55 = arith.mulf %52, %54 : vector<16x32xf32>
    %56 = vector.extract_strided_slice %31 {offsets = [2, 0], sizes = [1, 32], strides = [1, 1]} : vector<3x32xf32> to vector<1x32xf32>
    %57 = vector.broadcast %56 : vector<1x32xf32> to vector<16x32xf32>
    %58 = arith.addf %55, %57 : vector<16x32xf32>
    %cst_21 = arith.constant 0.000000e+00 : f32
    %59 = vector.broadcast %cst_21 : f32 to vector<16x32xf32>
    %60 = arith.maximumf %58, %59 : vector<16x32xf32>
    %c0_22 = arith.constant 0 : index
    %c0_23 = arith.constant 0 : index
    %61 = vector.load %arg6[%c0_22, %c0_23] : memref<32x3xf32, #tpu.memory_space<vmem>>, vector<32x3xf32>
    %cst_24 = arith.constant dense<0.000000e+00> : vector<16x3xf32>
    %62 = tpu.matmul %60, %61, %cst_24 {dimension_numbers = #tpu.dot_dimension_numbers<[1], [0], [0], [1], [0, 0, 1, 1], [], []>} : vector<16x32xf32>, vector<32x3xf32>, vector<16x3xf32> -> vector<16x3xf32>
    %c0_25 = arith.constant 0 : index
    %c0_26 = arith.constant 0 : index
    %63 = vector.load %arg7[%c0_25, %c0_26] : memref<1x3xf32, #tpu.memory_space<vmem>>, vector<1x3xf32>
    %64 = vector.broadcast %63 : vector<1x3xf32> to vector<16x3xf32>
    %65 = arith.addf %62, %64 : vector<16x3xf32>
    %66 = tpu.iota {dimensions = array<i32: 1>} : vector<16x3xi32>
    %c0_i32 = arith.constant 0 : i32
    %67 = vector.broadcast %c0_i32 : i32 to vector<16x3xi32>
    %68 = arith.cmpi eq, %66, %67 : vector<16x3xi32>
    %69 = math.tanh %65 : vector<16x3xf32>
    %c1_i32 = arith.constant 1 : i32
    %70 = vector.broadcast %c1_i32 : i32 to vector<16x3xi32>
    %71 = arith.cmpi eq, %66, %70 : vector<16x3xi32>
    %cst_27 = arith.constant -2.000000e+01 : f32
    %cst_28 = arith.constant 2.000000e+00 : f32
    %72 = vector.broadcast %cst_27 : f32 to vector<16x3xf32>
    %73 = arith.maximumf %72, %65 : vector<16x3xf32>
    %74 = vector.broadcast %cst_28 : f32 to vector<16x3xf32>
    %75 = arith.minimumf %74, %73 : vector<16x3xf32>
    %76 = arith.select %71, %75, %65 : vector<16x3xi1>, vector<16x3xf32>
    %77 = arith.select %68, %69, %76 : vector<16x3xi1>, vector<16x3xf32>
    %c0_29 = arith.constant 0 : index
    %c0_30 = arith.constant 0 : index
    %78 = vector.load %arg8[%c0_29, %c0_30] : memref<16x3xf32, #tpu.memory_space<vmem>>, vector<16x3xf32>
    tpu.vector_store %arg8[%c0_29, %c0_30], %77 {strides = array<i32>} : memref<16x3xf32, #tpu.memory_space<vmem>>, vector<16x3xf32>,
    return
  }
  func.func @transform_0(%arg0: i32) -> (i32, i32) {
    %c0_i32 = arith.constant 0 : i32
    %c0_i32_0 = arith.constant 0 : i32
    return %arg0, %c0_i32 : i32, i32
  }
  func.func @transform_1(%arg0: i32) -> (i32, i32) {
    %c0_i32 = arith.constant 0 : i32
    %c0_i32_0 = arith.constant 0 : i32
    %c0_i32_1 = arith.constant 0 : i32
    return %c0_i32, %c0_i32_0 : i32, i32
  }
  func.func @transform_2(%arg0: i32) -> (i32, i32) {
    %c0_i32 = arith.constant 0 : i32
    %c0_i32_0 = arith.constant 0 : i32
    %c0_i32_1 = arith.constant 0 : i32
    return %c0_i32, %c0_i32_0 : i32, i32
  }
  func.func @transform_3(%arg0: i32) -> (i32, i32) {
    %c0_i32 = arith.constant 0 : i32
    %c0_i32_0 = arith.constant 0 : i32
    %c0_i32_1 = arith.constant 0 : i32
    return %c0_i32, %c0_i32_0 : i32, i32
  }
  func.func @transform_4(%arg0: i32) -> (i32, i32) {
    %c0_i32 = arith.constant 0 : i32
    %c0_i32_0 = arith.constant 0 : i32
    %c0_i32_1 = arith.constant 0 : i32
    return %c0_i32, %c0_i32_0 : i32, i32
  }
  func.func @transform_5(%arg0: i32) -> (i32, i32) {
    %c0_i32 = arith.constant 0 : i32
    %c0_i32_0 = arith.constant 0 : i32
    %c0_i32_1 = arith.constant 0 : i32
    return %c0_i32, %c0_i32_0 : i32, i32
  }
  func.func @transform_6(%arg0: i32) -> (i32, i32) {
    %c0_i32 = arith.constant 0 : i32
    %c0_i32_0 = arith.constant 0 : i32
    %c0_i32_1 = arith.constant 0 : i32
    return %c0_i32, %c0_i32_0 : i32, i32
  }
  func.func @transform_7(%arg0: i32) -> (i32, i32) {
    %c0_i32 = arith.constant 0 : i32
    %c0_i32_0 = arith.constant 0 : i32
    return %arg0, %c0_i32 : i32, i32
  }
}

</mosaic_0001>

<llo_original>
// kernel: actor_forward.1
$region0: #{actor_forward.1}
  #allocation0 [shape = 'u32[]', space=smem, size = 0x4, offset = 0x4, fixed_abs, tag = 'smem constant byte address 0x4 - core index']
  #allocation1 [shape = 'u32[144,128]{1,0:T(1,128)}', space=vmem, size = 0x12000, scoped, tag = 'internal scratch']
  %s0 = inlined_call_operand.vmem [shape: f32[16,16], index: 0, kind: input, shape index: {}]
  %s1 = inlined_call_operand.hbm [shape: f32[16,32], index: 1, kind: input, shape index: {}]
  %s2 = inlined_call_operand.vmem [shape: f32[3,32], index: 2, kind: input, shape index: {}]
  %s3 = inlined_call_operand.vmem [shape: f32[32,32], index: 3, kind: input, shape index: {}]
  %s4 = inlined_call_operand.hbm [shape: f32[3,32], index: 4, kind: input, shape index: {}]
  %s5 = inlined_call_operand.vmem [shape: f32[32,3], index: 5, kind: input, shape index: {}]
  %s6 = inlined_call_operand.vmem [shape: f32[1,3], index: 6, kind: input, shape index: {}]
  %s7 = inlined_call_operand.vmem [shape: f32[16,3], index: 7, kind: output, shape index: {}]
  %s8 = sld [smem:[#allocation0]]
  $region46: #{actor_forward.1} parent=0
    _
  %s10 = ssub.s32 1, %s8
  %s11 = scalar_select 0, %s10, %s8
  $region1: #{actor_forward.1} parent=0
    #allocation2 [shape = 'u8[8192]{0}', space=vmem, size = 0x2000, scoped, tag = 'input window, operand 1, single buffered']
    #allocation3 [shape = 's32[1]{0}', space=sflag, size = 0x4, scoped, tag = 'scoped memory for actor_forward.1']
    #allocation4 [shape = 'u8[2048]{0}', space=vmem, size = 0x800, scoped, tag = 'input window, operand 4, single buffered']
    #allocation5 [shape = 's32[1]{0}', space=sflag, size = 0x4, scoped, tag = 'scoped memory for actor_forward.1']
    %12 = vsyncpa [#allocation3], 0
    %13 = vsyncpa [#allocation5], 0
    // Predicated region
    $region2: #{actor_forward.1} parent=1 // pred_check
      _
    $region3: #{actor_forward.1} parent=1 // pred_check_branch
      %15 = sbr.rel (0) target = $region5
    $region4: #{actor_forward.1} parent=1 // pred_region
      _
    $region5: #{actor_forward.1} parent=1 // pred_fallthru
      _
    // Predicated region
    $region6: #{actor_forward.1} parent=1 // pred_check
      _
    $region7: #{actor_forward.1} parent=1 // pred_check_branch
      %17 = sbr.rel (0) target = $region9
    $region8: #{actor_forward.1} parent=1 // pred_region
      %s19 = ssub.s32 256, 256
      %20 = vsyncadd [#allocation3], %s19
      %s21 = sshll.u32 [#allocation2], 4
      %s22 = int_to_ptr.vmem [resolvable:$true] %s21
      %27 = dma.hbm_to_vmem [thread:$0]  %s1, 256, %s22, [#allocation3], 128, 128, 8
    $region9: #{actor_forward.1} parent=1 // pred_fallthru
      _
    // Predicated region
    $region10: #{actor_forward.1} parent=1 // pred_check
      _
    $region11: #{actor_forward.1} parent=1 // pred_check_branch
      %29 = sbr.rel (0) target = $region13
    $region12: #{actor_forward.1} parent=1 // pred_region
      _
    $region13: #{actor_forward.1} parent=1 // pred_fallthru
      _
    // Predicated region
    $region14: #{actor_forward.1} parent=1 // pred_check
      _
    $region15: #{actor_forward.1} parent=1 // pred_check_branch
      %31 = sbr.rel (0) target = $region17
    $region16: #{actor_forward.1} parent=1 // pred_region
      _
    $region17: #{actor_forward.1} parent=1 // pred_fallthru
      _
    // Predicated region
    $region18: #{actor_forward.1} parent=1 // pred_check
      _
    $region19: #{actor_forward.1} parent=1 // pred_check_branch
      %33 = sbr.rel (0) target = $region21
    $region20: #{actor_forward.1} parent=1 // pred_region
      %s35 = ssub.s32 64, 64
      %36 = vsyncadd [#allocation5], %s35
      %s38 = sshll.u32 [#allocation4], 4
      %s39 = int_to_ptr.vmem [resolvable:$true] %s38
      %41 = dma.hbm_to_vmem [thread:$0]  %s4, 64, %s39, [#allocation5]
    $region21: #{actor_forward.1} parent=1 // pred_fallthru
      _
    // Predicated region
    $region22: #{actor_forward.1} parent=1 // pred_check
      _
    $region23: #{actor_forward.1} parent=1 // pred_check_branch
      %43 = sbr.rel (0) target = $region25
    $region24: #{actor_forward.1} parent=1 // pred_region
      _
    $region25: #{actor_forward.1} parent=1 // pred_fallthru
      _
    // Predicated region
    $region26: #{actor_forward.1} parent=1 // pred_check
      _
    $region27: #{actor_forward.1} parent=1 // pred_check_branch
      %45 = sbr.rel (0) target = $region29
    $region28: #{actor_forward.1} parent=1 // pred_region
      _
    $region29: #{actor_forward.1} parent=1 // pred_fallthru
      _
    // Predicated region
    $region30: #{actor_forward.1} parent=1 // pred_check
      _
    $region31: #{actor_forward.1} parent=1 // pred_check_branch
      %47 = sbr.rel (0) target = $region33
    $region32: #{actor_forward.1} parent=1 // pred_region
      %48 = dma.done [#allocation3], 256
    $region33: #{actor_forward.1} parent=1 // pred_fallthru
      _
    // Predicated region
    $region34: #{actor_forward.1} parent=1 // pred_check
      _
    $region35: #{actor_forward.1} parent=1 // pred_check_branch
      %50 = sbr.rel (0) target = $region37
    $region36: #{actor_forward.1} parent=1 // pred_region
      %51 = dma.done [#allocation5], 64
    $region37: #{actor_forward.1} parent=1 // pred_fallthru
      _
    %v52 = vld [vmem:[%s0] sm:$0xff]
    %v53 = vld [vmem:[%s0 + $0x8] sm:$0xff]
    %v54 = vld [vmem:[%s2] sm:$0x7]
    %v55 = vld [vmem:[#allocation2] sm:$0xff]
    %v56 = vld [vmem:[#allocation2 + $0x8] sm:$0xff]
    %v57 = vlaneseq
    %v58 = vshrl.u32 %v57, 7
    %v59 = vsub.s32 0, %v58
    %v60 = vrot.slane %v54, %v59
    %vm61 = vcmask 130048
    %v63 = vsel %vm61, %v52, 0
    %v66 = vsel %vm61, %v53, 0
    %68 = vmatprep.subr.mxu0 0.0
    %69 = vmatpush1.msra.mxu0 %v55
    %70 = vmatprep.subr.mxu0 0.0
    %71 = vmatpush1.msra.mxu0 %v56
    %72 = vmatprep.subr.mxu0 0.0
    %73 = vmatpush1.msra.mxu0 0.0
    %74 = vmatprep.subr.mxu0 0.0
    %75 = vmatpush1.msra.mxu0 0.0
    %76 = vmatprep.subr.mxu0 0.0
    %77 = vmatpush1.msra.mxu0 0.0
    %78 = vmatprep.subr.mxu0 0.0
    %79 = vmatpush1.msra.mxu0 0.0
    %80 = vmatprep.subr.mxu0 0.0
    %81 = vmatpush1.msra.mxu0 0.0
    %82 = vmatprep.subr.mxu0 0.0
    %83 = vmatpush1.msra.mxu0 0.0
    %84 = vmatprep.subr.mxu0 0.0
    %85 = vmatpush1.msra.mxu0 0.0
    %86 = vmatprep.subr.mxu0 0.0
    %87 = vmatpush1.msra.mxu0 0.0
    %88 = vmatprep.subr.mxu0 0.0
    %89 = vmatpush1.msra.mxu0 0.0
    %90 = vmatprep.subr.mxu0 0.0
    %91 = vmatpush1.msra.mxu0 0.0
    %92 = vmatprep.subr.mxu0 0.0
    %93 = vmatpush1.msra.mxu0 0.0
    %94 = vmatprep.subr.mxu0 0.0
    %95 = vmatpush1.msra.mxu0 0.0
    %96 = vmatprep.subr.mxu0 0.0
    %97 = vmatpush1.msra.mxu0 0.0
    %98 = vmatprep.subr.mxu0 0.0
    %99 = vmatpush1.msra.mxu0 0.0
    %100 = vmatprep.subr.mxu0 0.0
    %101 = vmatpush1.msra.mxu0 0.0
    %102 = vmatprep.subr.mxu0 0.0
    %103 = vmatpush1.msra.mxu0 0.0
    %104 = vmatprep.subr.mxu0 0.0
    %105 = vmatpush1.msra.mxu0 0.0
    %106 = vmatprep.subr.mxu0 0.0
    %107 = vmatpush1.msra.mxu0 0.0
    %108 = vmatprep.subr.mxu0 0.0
    %109 = vmatpush1.msra.mxu0 0.0
    %110 = vmatprep.subr.mxu0 0.0
    %111 = vmatpush1.msra.mxu0 0.0
    %112 = vmatprep.subr.mxu0 0.0
    %113 = vmatpush1.msra.mxu0 0.0
    %114 = vmatprep.subr.mxu0 0.0
    %115 = vmatpush1.msra.mxu0 0.0
    %116 = vmatprep.subr.mxu0 0.0
    %117 = vmatpush1.msra.mxu0 0.0
    %118 = vmatprep.subr.mxu0 0.0
    %119 = vmatpush1.msra.mxu0 0.0
    %120 = vmatprep.subr.mxu0 0.0
    %121 = vmatpush1.msra.mxu0 0.0
    %122 = vmatprep.subr.mxu0 0.0
    %123 = vmatpush1.msra.mxu0 0.0
    %124 = vmatprep.subr.mxu0 0.0
    %125 = vmatpush1.msra.mxu0 0.0
    %126 = vmatprep.subr.mxu0 0.0
    %127 = vmatpush1.msra.mxu0 0.0
    %128 = vmatprep.subr.mxu0 0.0
    %129 = vmatpush1.msra.mxu0 0.0
    %130 = vmatprep.subr.mxu0 0.0
    %131 = vmatpush1.msra.mxu0 0.0
    %132 = vmatprep.mubr.f32.mxu0 0.0
    %133 = vmatmul.mubr.f32.gmra.mrb[0].mxu0 %v63
    %v134 = vpop.f32.mrb[0].mxu0
    %v135 = vadd.f32 %v60, %v134
    %v136 = vpop.f32.mrb[0].mxu0
    %137 = vmatprep.mubr.f32.mxu0 0.0
    %138 = vmatmul.mubr.f32.gmra.mrb[0].mxu0 %v66
    %v139 = vpop.f32.mrb[0].mxu0
    %v140 = vadd.f32 %v60, %v139
    %v141 = vpop.f32.mrb[0].mxu0
    %142 = vdwg.mxu0
    %vm143 = vcmask 261120
    %v144 = vsel %vm143, %v135, 0.0
    %145 = vadd.xlane.f32.xlu0 %v144
    %v146 = vpop.xlane.xlu0 %145
    %v147 = vsel %vm143, %v140, 0.0
    %148 = vadd.xlane.f32.xlu0 %v147
    %v149 = vpop.xlane.xlu0 %148
    %v150 = vrcp.pop 32.0
    %v151 = vmul.f32 %v146, %v150
    %v152 = vmul.f32 %v149, %v150
    %v153 = vsub.f32 %v135, %v151
    %v154 = vsub.f32 %v140, %v152
    %v155 = vmul.f32 %v153, %v153
    %v156 = vmul.f32 %v154, %v154
    %v157 = vsel %vm143, %v155, 0.0
    %158 = vadd.xlane.f32.xlu0 %v157
    %v159 = vpop.xlane.xlu0 %158
    %v160 = vsel %vm143, %v156, 0.0
    %161 = vadd.xlane.f32.xlu0 %v160
    %v162 = vpop.xlane.xlu0 %161
    %v163 = vmul.f32 %v159, %v150
    %v164 = vmul.f32 %v162, %v150
    %v165 = vadd.f32 %v163, 1e-05
    %v166 = vadd.f32 %v164, 1e-05
    %v167 = vrsqrt.pop %v165
    %v168 = vrsqrt.pop %v166
    %v169 = vmul.f32 %v153, %v167
    %v170 = vmul.f32 %v154, %v168
    %v171 = vlaneseq
    %v172 = vshrl.u32 %v171, 7
    %v173 = vsub.s32 1, %v172
    %v174 = vrot.slane %v54, %v173
    %v175 = vmul.f32 %v169, %v174
    %v176 = vmul.f32 %v170, %v174
    %v177 = vlaneseq
    %v178 = vshrl.u32 %v177, 7
    %v179 = vsub.s32 2, %v178
    %v180 = vrot.slane %v54, %v179
    %v181 = vadd.f32 %v175, %v180
    %v182 = vadd.f32 %v176, %v180
    %v183 = vmax.f32 %v181, 0.0
    %v184 = vmax.f32 %v182, 0.0
    %v185 = vld [vmem:[#allocation4] sm:$0x7]
    %v186 = vld [vmem:[%s3] sm:$0xff]
    %v187 = vld [vmem:[%s3 + $0x8] sm:$0xff]
    %v188 = vld [vmem:[%s3 + $0x10] sm:$0xff]
    %v189 = vld [vmem:[%s3 + $0x18] sm:$0xff]
    %v190 = vlaneseq
    %v191 = vshrl.u32 %v190, 7
    %v192 = vsub.s32 0, %v191
    %v193 = vrot.slane %v185, %v192
    %v195 = vsel %vm143, %v183, 0
    %v198 = vsel %vm143, %v184, 0
    %200 = vmatprep.subr.mxu0 0.0
    %201 = vmatpush1.msra.mxu0 %v186
    %202 = vmatprep.subr.mxu0 0.0
    %203 = vmatpush1.msra.mxu0 %v187
    %204 = vmatprep.subr.mxu0 0.0
    %205 = vmatpush1.msra.mxu0 %v188
    %206 = vmatprep.subr.mxu0 0.0
    %207 = vmatpush1.msra.mxu0 %v189
    %208 = vmatprep.subr.mxu0 0.0
    %209 = vmatpush1.msra.mxu0 0.0
    %210 = vmatprep.subr.mxu0 0.0
    %211 = vmatpush1.msra.mxu0 0.0
    %212 = vmatprep.subr.mxu0 0.0
    %213 = vmatpush1.msra.mxu0 0.0
    %214 = vmatprep.subr.mxu0 0.0
    %215 = vmatpush1.msra.mxu0 0.0
    %216 = vmatprep.subr.mxu0 0.0
    %217 = vmatpush1.msra.mxu0 0.0
    %218 = vmatprep.subr.mxu0 0.0
    %219 = vmatpush1.msra.mxu0 0.0
    %220 = vmatprep.subr.mxu0 0.0
    %221 = vmatpush1.msra.mxu0 0.0
    %222 = vmatprep.subr.mxu0 0.0
    %223 = vmatpush1.msra.mxu0 0.0
    %224 = vmatprep.subr.mxu0 0.0
    %225 = vmatpush1.msra.mxu0 0.0
    %226 = vmatprep.subr.mxu0 0.0
    %227 = vmatpush1.msra.mxu0 0.0
    %228 = vmatprep.subr.mxu0 0.0
    %229 = vmatpush1.msra.mxu0 0.0
    %230 = vmatprep.subr.mxu0 0.0
    %231 = vmatpush1.msra.mxu0 0.0
    %232 = vmatprep.subr.mxu0 0.0
    %233 = vmatpush1.msra.mxu0 0.0
    %234 = vmatprep.subr.mxu0 0.0
    %235 = vmatpush1.msra.mxu0 0.0
    %236 = vmatprep.subr.mxu0 0.0
    %237 = vmatpush1.msra.mxu0 0.0
    %238 = vmatprep.subr.mxu0 0.0
    %239 = vmatpush1.msra.mxu0 0.0
    %240 = vmatprep.subr.mxu0 0.0
    %241 = vmatpush1.msra.mxu0 0.0
    %242 = vmatprep.subr.mxu0 0.0
    %243 = vmatpush1.msra.mxu0 0.0
    %244 = vmatprep.subr.mxu0 0.0
    %245 = vmatpush1.msra.mxu0 0.0
    %246 = vmatprep.subr.mxu0 0.0
    %247 = vmatpush1.msra.mxu0 0.0
    %248 = vmatprep.subr.mxu0 0.0
    %249 = vmatpush1.msra.mxu0 0.0
    %250 = vmatprep.subr.mxu0 0.0
    %251 = vmatpush1.msra.mxu0 0.0
    %252 = vmatprep.subr.mxu0 0.0
    %253 = vmatpush1.msra.mxu0 0.0
    %254 = vmatprep.subr.mxu0 0.0
    %255 = vmatpush1.msra.mxu0 0.0
    %256 = vmatprep.subr.mxu0 0.0
    %257 = vmatpush1.msra.mxu0 0.0
    %258 = vmatprep.subr.mxu0 0.0
    %259 = vmatpush1.msra.mxu0 0.0
    %260 = vmatprep.subr.mxu0 0.0
    %261 = vmatpush1.msra.mxu0 0.0
    %262 = vmatprep.subr.mxu0 0.0
    %263 = vmatpush1.msra.mxu0 0.0
    %264 = vmatprep.mubr.f32.mxu0 0.0
    %265 = vmatmul.mubr.f32.gmra.mrb[0].mxu0 %v195
    %v266 = vpop.f32.mrb[0].mxu0
    %v267 = vadd.f32 %v193, %v266
    %v268 = vpop.f32.mrb[0].mxu0
    %269 = vmatprep.mubr.f32.mxu0 0.0
    %270 = vmatmul.mubr.f32.gmra.mrb[0].mxu0 %v198
    %v271 = vpop.f32.mrb[0].mxu0
    %v272 = vadd.f32 %v193, %v271
    %v273 = vpop.f32.mrb[0].mxu0
    %274 = vdwg.mxu0
    %v275 = vsel %vm143, %v267, 0.0
    %276 = vadd.xlane.f32.xlu0 %v275
    %v277 = vpop.xlane.xlu0 %276
    %v278 = vsel %vm143, %v272, 0.0
    %279 = vadd.xlane.f32.xlu0 %v278
    %v280 = vpop.xlane.xlu0 %279
    %v281 = vmul.f32 %v277, %v150
    %v282 = vmul.f32 %v280, %v150
    %v283 = vsub.f32 %v267, %v281
    %v284 = vsub.f32 %v272, %v282
    %v285 = vmul.f32 %v283, %v283
    %v286 = vmul.f32 %v284, %v284
    %v287 = vsel %vm143, %v285, 0.0
    %288 = vadd.xlane.f32.xlu0 %v287
    %v289 = vpop.xlane.xlu0 %288
    %v290 = vsel %vm143, %v286, 0.0
    %291 = vadd.xlane.f32.xlu0 %v290
    %v292 = vpop.xlane.xlu0 %291
    %v293 = vmul.f32 %v289, %v150
    %v294 = vmul.f32 %v292, %v150
    %v295 = vadd.f32 %v293, 1e-05
    %v296 = vadd.f32 %v294, 1e-05
    %v297 = vrsqrt.pop %v295
    %v298 = vrsqrt.pop %v296
    %v299 = vmul.f32 %v283, %v297
    %v300 = vmul.f32 %v284, %v298
    %v301 = vlaneseq
    %v302 = vshrl.u32 %v301, 7
    %v303 = vsub.s32 1, %v302
    %v304 = vrot.slane %v185, %v303
    %v305 = vmul.f32 %v299, %v304
    %v306 = vmul.f32 %v300, %v304
    %v307 = vlaneseq
    %v308 = vshrl.u32 %v307, 7
    %v309 = vsub.s32 2, %v308
    %v310 = vrot.slane %v185, %v309
    %v311 = vadd.f32 %v305, %v310
    %v312 = vadd.f32 %v306, %v310
    %v313 = vmax.f32 %v311, 0.0
    %v314 = vmax.f32 %v312, 0.0
    %v315 = vld [vmem:[%s5] sm:$0xff]
    %v316 = vld [vmem:[%s5 + $0x8] sm:$0xff]
    %v317 = vld [vmem:[%s5 + $0x10] sm:$0xff]
    %v318 = vld [vmem:[%s5 + $0x18] sm:$0xff]
    %v319 = vld [vmem:[%s6] sm:$0x1]
    %v321 = vlaneseq
    %v322 = vshrl.u32 %v321, 7
    %v323 = vsub.s32 0, %v322
    %v324 = vrot.slane %v319, %v323
    %v327 = vsel %vm143, %v313, 0
    %v330 = vsel %vm143, %v314, 0
    %332 = vmatprep.subr.mxu0 0.0
    %333 = vmatpush1.msra.mxu0 %v315
    %334 = vmatprep.subr.mxu0 0.0
    %335 = vmatpush1.msra.mxu0 %v316
    %336 = vmatprep.subr.mxu0 0.0
    %337 = vmatpush1.msra.mxu0 %v317
    %338 = vmatprep.subr.mxu0 0.0
    %339 = vmatpush1.msra.mxu0 %v318
    %340 = vmatprep.subr.mxu0 0.0
    %341 = vmatpush1.msra.mxu0 0.0
    %342 = vmatprep.subr.mxu0 0.0
    %343 = vmatpush1.msra.mxu0 0.0
    %344 = vmatprep.subr.mxu0 0.0
    %345 = vmatpush1.msra.mxu0 0.0
    %346 = vmatprep.subr.mxu0 0.0
    %347 = vmatpush1.msra.mxu0 0.0
    %348 = vmatprep.subr.mxu0 0.0
    %349 = vmatpush1.msra.mxu0 0.0
    %350 = vmatprep.subr.mxu0 0.0
    %351 = vmatpush1.msra.mxu0 0.0
    %352 = vmatprep.subr.mxu0 0.0
    %353 = vmatpush1.msra.mxu0 0.0
    %354 = vmatprep.subr.mxu0 0.0
    %355 = vmatpush1.msra.mxu0 0.0
    %356 = vmatprep.subr.mxu0 0.0
    %357 = vmatpush1.msra.mxu0 0.0
    %358 = vmatprep.subr.mxu0 0.0
    %359 = vmatpush1.msra.mxu0 0.0
    %360 = vmatprep.subr.mxu0 0.0
    %361 = vmatpush1.msra.mxu0 0.0
    %362 = vmatprep.subr.mxu0 0.0
    %363 = vmatpush1.msra.mxu0 0.0
    %364 = vmatprep.subr.mxu0 0.0
    %365 = vmatpush1.msra.mxu0 0.0
    %366 = vmatprep.subr.mxu0 0.0
    %367 = vmatpush1.msra.mxu0 0.0
    %368 = vmatprep.subr.mxu0 0.0
    %369 = vmatpush1.msra.mxu0 0.0
    %370 = vmatprep.subr.mxu0 0.0
    %371 = vmatpush1.msra.mxu0 0.0
    %372 = vmatprep.subr.mxu0 0.0
    %373 = vmatpush1.msra.mxu0 0.0
    %374 = vmatprep.subr.mxu0 0.0
    %375 = vmatpush1.msra.mxu0 0.0
    %376 = vmatprep.subr.mxu0 0.0
    %377 = vmatpush1.msra.mxu0 0.0
    %378 = vmatprep.subr.mxu0 0.0
    %379 = vmatpush1.msra.mxu0 0.0
    %380 = vmatprep.subr.mxu0 0.0
    %381 = vmatpush1.msra.mxu0 0.0
    %382 = vmatprep.subr.mxu0 0.0
    %383 = vmatpush1.msra.mxu0 0.0
    %384 = vmatprep.subr.mxu0 0.0
    %385 = vmatpush1.msra.mxu0 0.0
    %386 = vmatprep.subr.mxu0 0.0
    %387 = vmatpush1.msra.mxu0 0.0
    %388 = vmatprep.subr.mxu0 0.0
    %389 = vmatpush1.msra.mxu0 0.0
    %390 = vmatprep.subr.mxu0 0.0
    %391 = vmatpush1.msra.mxu0 0.0
    %392 = vmatprep.subr.mxu0 0.0
    %393 = vmatpush1.msra.mxu0 0.0
    %394 = vmatprep.subr.mxu0 0.0
    %395 = vmatpush1.msra.mxu0 0.0
    %396 = vmatprep.mubr.f32.mxu0 0.0
    %397 = vmatmul.mubr.f32.gmra.mrb[0].mxu0 %v327
    %v398 = vpop.f32.mrb[0].mxu0
    %v399 = vadd.f32 %v324, %v398
    %v400 = vpop.f32.mrb[0].mxu0
    %401 = vmatprep.mubr.f32.mxu0 0.0
    %402 = vmatmul.mubr.f32.gmra.mrb[0].mxu0 %v330
    %v403 = vpop.f32.mrb[0].mxu0
    %v404 = vadd.f32 %v324, %v403
    %v405 = vpop.f32.mrb[0].mxu0
    %406 = vdwg.mxu0
    %v407 = vlaneseq
    %v408 = vand.u32 %v407, 127
    %vm409 = vcmp.eq.s32.totalorder %v408, 0
    %v410 = vtanh.pop %v399
    %v411 = vtanh.pop %v404
    %vm412 = vcmp.eq.s32.totalorder %v408, 1
    %v413 = vmax.f32 %v399, -20.0
    %v414 = vmax.f32 %v404, -20.0
    %v415 = vmin.f32 %v413, 2.0
    %v416 = vmin.f32 %v414, 2.0
    %v417 = vsel %vm412, %v415, %v399
    %v418 = vsel %vm412, %v416, %v404
    %v419 = vsel %vm409, %v410, %v417
    %v420 = vsel %vm409, %v411, %v418
    %vm421 = vcmask 23552
    %422 = vst.msk [vmem:[%s7] sm:$0xff] %vm421, %v419
    %423 = vst.msk [vmem:[%s7 + $0x8] sm:$0xff] %vm421, %v420
    // Predicated region
    $region38: #{actor_forward.1} parent=1 // pred_check
      _
    $region39: #{actor_forward.1} parent=1 // pred_check_branch
      %425 = sbr.rel (0) target = $region41
    $region40: #{actor_forward.1} parent=1 // pred_region
      _
    $region41: #{actor_forward.1} parent=1 // pred_fallthru
      _
    // Predicated region
    $region42: #{actor_forward.1} parent=1 // pred_check
      _
    $region43: #{actor_forward.1} parent=1 // pred_check_branch
      %427 = sbr.rel (0) target = $region45
    $region44: #{actor_forward.1} parent=1 // pred_region
      _
    $region45: #{actor_forward.1} parent=1 // pred_fallthru
      _
    %428 = vsyncpa [#allocation3], 1
    %429 = vsyncpa [#allocation5], 1

</llo_original>
